<compile_context>
chip_gen: v6e
topology: v6e:2x2x1
jax: 0.10.0
libtpu: 0.0.40
codegen_flags: <defaults>
</compile_context>

<pallas_src>
import functools

import numpy as np
import jax
import jax.numpy as jnp
from jax import lax
from jax.experimental import pallas as pl
from jax.experimental.pallas import tpu as pltpu


def _round_up(x, m):
    return ((x + m - 1) // m) * m


# ----------------------------------------------------------------------------------
# Shared in-kernel helpers
# ----------------------------------------------------------------------------------
def _softmax_last(x):
    """softmax along the last dim; denominator via EUP approx reciprocal."""
    m = jnp.max(x, axis=-1, keepdims=True)
    e = jnp.exp(x - m)
    return e * pl.reciprocal(jnp.sum(e, axis=-1, keepdims=True), approx=True)


# ----------------------------------------------------------------------------------
# Kernel 1: fused Linear (+ optional tanh) (+ optional F.normalize along last dim)
# Used for: patch embedding, surrogate text layer, vision_proj, text_proj.
# M-tiled grid, bf16 MXU inputs, f32 accumulation + f32 epilogue, bf16 output.
# ----------------------------------------------------------------------------------
def _linear_kernel(x_ref, w_ref, b_ref, o_ref, *, activation, normalize):
    y = jnp.dot(x_ref[...], w_ref[...], preferred_element_type=jnp.float32)
    y = y + b_ref[...]
    if activation == "tanh":
        y = jnp.tanh(y)
    if normalize:
        ss = jnp.sum(y * y, axis=-1, keepdims=True)
        y = y * lax.rsqrt(jnp.maximum(ss, 1e-24))     # F.normalize (eps=1e-12) semantics
    o_ref[...] = y.astype(o_ref.dtype)


def pallas_linear(x, w, b, *, activation=None, normalize=False, tm=512,
                  out_dtype=jnp.bfloat16):
    n, din = x.shape
    dout = w.shape[1]

    # bf16 activations BEFORE padding (half the staging bytes); weights are expected
    # pre-padded / pre-cast once in make_params (pad/cast here is a traced no-op then).
    x = x.astype(jnp.bfloat16)
    w = w.astype(jnp.bfloat16)
    din_p = _round_up(din, 128)            # full-MXU contraction (e.g. 192 -> 256)
    if x.shape[1] != din_p:
        x = jnp.pad(x, ((0, 0), (0, din_p - x.shape[1])))
    if w.shape[0] != din_p:
        w = jnp.pad(w, ((0, din_p - w.shape[0]), (0, 0)))
    b = b.reshape(1, dout).astype(jnp.float32)

    # M tile: 16-row granularity (bf16 sublane packing); make the 'parallel' grid
    # have >=2 steps when there is enough work (v7x megacore).
    ROW = 16
    n_r = _round_up(n, ROW)
    tm_eff = max(ROW, min(_round_up(tm, ROW), n_r))
    if (n_r // tm_eff) < 2 and n_r >= 2 * ROW:
        tm_eff = _round_up((n_r + 1) // 2, ROW)
    n_p = _round_up(n, tm_eff)
    if n_p != n:
        x = jnp.pad(x, ((0, n_p - n), (0, 0)))

    kern = functools.partial(_linear_kernel, activation=activation, normalize=normalize)
    out = pl.pallas_call(
        kern,
        out_shape=jax.ShapeDtypeStruct((n_p, dout), out_dtype),
        grid=(n_p // tm_eff,),
        in_specs=[
            pl.BlockSpec((tm_eff, din_p), lambda i: (i, 0)),
            pl.BlockSpec((din_p, dout), lambda i: (0, 0)),   # weight stays resident
            pl.BlockSpec((1, dout), lambda i: (0, 0)),
        ],
        out_specs=pl.BlockSpec((tm_eff, dout), lambda i: (i, 0)),
        compiler_params=pltpu.CompilerParams(
            dimension_semantics=("parallel",),
            vmem_limit_bytes=48 * 1024 * 1024),
    )(x, w, b)
    return out[:n]


# ----------------------------------------------------------------------------------
# Kernel 2: ITC (video-text contrastive) loss.
# Single device: hvd.allgather == identity, local_rank == 0, targets == eye(b).
# One MXU matmul, ONE exp pass (shared for row/col logsumexp), diagonal from a direct
# per-row dot of the features (no eye matrix), inv_temp baked in at compile time.
# TODO(synk): multi-device / large global batch needs a flash-style row/col-tiled
#             version (streaming lse) so the (b,b) sim never exceeds v7x VMEM.
# ----------------------------------------------------------------------------------
def _itc_kernel(vf_ref, tf_ref, o_ref, *, inv_temp):
    vf = vf_ref[...]                                    # (b, d) bf16
    tf = tf_ref[...]
    sim = lax.dot_general(vf, tf, (((1,), (1,)), ((), ())),
                          preferred_element_type=jnp.float32) * inv_temp    # (b, b)
    b = sim.shape[0]
    # diagonal directly from the features: sim[i,i] = <vf_i, tf_i> * inv_temp
    diag = jnp.sum(vf.astype(jnp.float32) * tf.astype(jnp.float32),
                   axis=-1, keepdims=True) * inv_temp                        # (b, 1)
    gmax = jnp.max(sim)
    e = jnp.exp(sim - gmax)                             # single exp pass over (b,b)
    lse_row = jnp.log(jnp.sum(e, axis=-1, keepdims=True)) + gmax            # (b, 1)
    lse_col = jnp.log(jnp.sum(e, axis=-2, keepdims=True)) + gmax            # (1, b)
    sum_diag = jnp.sum(diag)
    loss_v2t = (jnp.sum(lse_row) - sum_diag) / b        # rows  = sim_v2t
    loss_t2v = (jnp.sum(lse_col) - sum_diag) / b        # cols  = sim_t2v
    o_ref[...] = jnp.zeros_like(o_ref) + 0.5 * (loss_v2t + loss_t2v)


def pallas_itc_loss(video_feat, text_feat, temp):
    b, d = video_feat.shape
    kern = functools.partial(_itc_kernel, inv_temp=float(1.0 / temp))
    out = pl.pallas_call(
        kern,
        out_shape=jax.ShapeDtypeStruct((1, 1), jnp.float32),
        grid=(1,),
        in_specs=[
            pl.BlockSpec((b, d), lambda i: (0, 0)),
            pl.BlockSpec((b, d), lambda i: (0, 0)),
        ],
        out_specs=pl.BlockSpec((1, 1), lambda i: (0, 0)),
        compiler_params=pltpu.CompilerParams(dimension_semantics=("arbitrary",)),
    )(video_feat.astype(jnp.bfloat16), text_feat.astype(jnp.bfloat16))
    return out[0, 0]


# ----------------------------------------------------------------------------------
# Kernel 3: MCL (local word<->patch alignment) loss.
# Batched over batch items per grid step; batched einsums; no transposes; CE diagonals
# from direct per-row dots; one exp pass per similarity matrix (shared row/col lse);
# per-item partial losses written to a lane-dense (nblk, bz_blk, 128) output.
# ----------------------------------------------------------------------------------
def _mcl_kernel(word_ref, patch_ref, aux_ref, o_ref, *, inv_temp, n_word, n_patch):
    we = word_ref[...]          # (BZ, W, D) bf16, L2-normalized word embeddings
    pe = patch_ref[...]         # (BZ, P, D) bf16, L2-normalized patch embeddings
    aux = aux_ref[...]          # (BZ, 3, LANE) f32: [pad_mask | word_w | patch_w]
    pad = aux[:, 0, :n_word]    # (BZ, W) 1.0 where word token is [PAD]
    ww = aux[:, 1, :n_word]     # (BZ, W) word attention weights (normalized)
    pw = aux[:, 2, :n_patch]    # (BZ, P) patch attention weights (normalized)
    we_f = we.astype(jnp.float32)
    pe_f = pe.astype(jnp.float32)

    # ---- word side: word -> patch cross attention, then word vs attended-patch CE ----
    atten_sim = jnp.einsum('bwd,bpd->bwp', we, pe,
                           preferred_element_type=jnp.float32)              # (BZ, W, P)
    atten_scores = _softmax_last(atten_sim * inv_temp)
    wao = jnp.einsum('bwp,bpd->bwd', atten_scores.astype(jnp.bfloat16), pe,
                     preferred_element_type=jnp.float32)                    # (BZ, W, D)
    wao = wao * lax.rsqrt(jnp.maximum(jnp.sum(wao * wao, -1, keepdims=True), 1e-24))
    word_sim = jnp.einsum('bwd,bvd->bwv', we, wao.astype(jnp.bfloat16),
                          preferred_element_type=jnp.float32) * inv_temp    # (BZ, W, W)
    diag_w = jnp.sum(we_f * wao, axis=-1) * inv_temp        # (BZ, W) direct diagonal
    gm_w = jnp.max(jnp.max(word_sim, -1, keepdims=True), -2, keepdims=True)  # (BZ,1,1)
    e_w = jnp.exp(word_sim - gm_w)                          # single exp pass
    lse_row_w = jnp.log(jnp.sum(e_w, -1)) + gm_w[..., 0]    # (BZ, W) targets = rows
    lse_col_w = jnp.log(jnp.sum(e_w, -2)) + gm_w[:, 0, :]   # (BZ, W) targets = cols
    loss_word = 0.5 * (jnp.sum((lse_row_w - diag_w) * ww, -1, keepdims=True)
                       + jnp.sum((lse_col_w - diag_w) * ww, -1, keepdims=True))  # (BZ,1)

    # ---- patch side: patch -> word cross attention ([PAD] masked), then patch CE ----
    sim_pw = jnp.einsum('bpd,bwd->bpw', pe, we,
                        preferred_element_type=jnp.float32)                 # (BZ, P, W)
    sim_pw = jnp.where(pad[:, None, :] > 0.5, -1e30, sim_pw * inv_temp)     # mask [PAD]
    scores_p = _softmax_last(sim_pw)
    pao = jnp.einsum('bpw,bwd->bpd', scores_p.astype(jnp.bfloat16), we,
                     preferred_element_type=jnp.float32)   # NOT normalized (matches ref)
    patch_sim = jnp.einsum('bpd,bqd->bpq', pe, pao.astype(jnp.bfloat16),
                           preferred_element_type=jnp.float32) * inv_temp   # (BZ, P, P)
    diag_p = jnp.sum(pe_f * pao, axis=-1) * inv_temp        # (BZ, P) direct diagonal
    gm_p = jnp.max(jnp.max(patch_sim, -1, keepdims=True), -2, keepdims=True)
    e_p = jnp.exp(patch_sim - gm_p)
    lse_row_p = jnp.log(jnp.sum(e_p, -1)) + gm_p[..., 0]
    lse_col_p = jnp.log(jnp.sum(e_p, -2)) + gm_p[:, 0, :]
    loss_patch = 0.5 * (jnp.sum((lse_row_p - diag_p) * pw, -1, keepdims=True)
                        + jnp.sum((lse_col_p - diag_p) * pw, -1, keepdims=True))  # (BZ,1)

    loss_items = (loss_word + loss_patch)[None]             # (1, BZ, 1)
    lane = lax.broadcasted_iota(jnp.int32, o_ref.shape, 2)
    o_ref[...] = jnp.where(lane == 0, loss_items, 0.0)      # lane-dense per-item output


def pallas_mcl_loss(word_emb, patch_emb, pad_mask, word_w, patch_w,
                    local_temp=0.1, max_bz_blk=4):
    bz, Wn, D = word_emb.shape
    P = patch_emb.shape[1]
    lane = max(128, _round_up(max(Wn, P), 128))

    # small batch block (v7x 64 MiB VMEM headroom at realistic n_patch); >=2 grid
    # steps whenever bz >= 2 so both v7x TensorCores get work.
    bz_blk = 1 if bz == 1 else min(max_bz_blk, max(1, bz // 2))
    bz_p = _round_up(bz, bz_blk)
    nblk = bz_p // bz_blk

    def _pad_b(x):
        return jnp.pad(x, ((0, bz_p - bz),) + ((0, 0),) * (x.ndim - 1))

    we = _pad_b(word_emb.astype(jnp.bfloat16))
    pe = _pad_b(patch_emb.astype(jnp.bfloat16))
    # pack pad / word_w / patch_w into a single lane-padded aux array
    aux = jnp.zeros((bz_p, 3, lane), jnp.float32)
    aux = aux.at[:bz, 0, :Wn].set(pad_mask.astype(jnp.float32))
    aux = aux.at[:bz, 1, :Wn].set(word_w.astype(jnp.float32))
    aux = aux.at[:bz, 2, :P].set(patch_w.astype(jnp.float32))

    kern = functools.partial(_mcl_kernel, inv_temp=float(1.0 / local_temp),
                             n_word=Wn, n_patch=P)
    out = pl.pallas_call(
        kern,
        out_shape=jax.ShapeDtypeStruct((nblk, bz_blk, 128), jnp.float32),
        grid=(nblk,),
        in_specs=[
            pl.BlockSpec((bz_blk, Wn, D), lambda i: (i, 0, 0)),
            pl.BlockSpec((bz_blk, P, D), lambda i: (i, 0, 0)),
            pl.BlockSpec((bz_blk, 3, lane), lambda i: (i, 0, 0)),
        ],
        out_specs=pl.BlockSpec((1, bz_blk, 128), lambda i: (i, 0, 0)),
        compiler_params=pltpu.CompilerParams(
            dimension_semantics=("parallel",),
            vmem_limit_bytes=48 * 1024 * 1024),
    )(we, pe, aux)
    # padded items have zero weights -> zero contribution
    return jnp.sum(out) / bz


# ----------------------------------------------------------------------------------
# Device-side helpers for MCL attention-weight preparation (no host sync / loops)
# ----------------------------------------------------------------------------------
def _masked_quantile(x, valid, q):
    """Per-row linear-interp quantile over entries where `valid` (matches torch.quantile)."""
    n = x.shape[1]
    xs = jnp.sort(jnp.where(valid, x, jnp.inf), axis=1)       # valid values first
    k = jnp.sum(valid, axis=1)
    kk = jnp.maximum(k, 1)
    pos = q * (kk.astype(jnp.float32) - 1.0)
    lo = jnp.clip(jnp.floor(pos).astype(jnp.int32), 0, n - 1)
    hi = jnp.clip(jnp.ceil(pos).astype(jnp.int32), 0, n - 1)
    frac = (pos - jnp.floor(pos))[:, None]
    v_lo = jnp.take_along_axis(xs, lo[:, None], axis=1)
    v_hi = jnp.take_along_axis(xs, hi[:, None], axis=1)
    res = v_lo * (1.0 - frac) + v_hi * frac                    # (B, 1)
    return jnp.where(k[:, None] > 0, res, 0.0)                 # guard all-[PAD] rows


# ----------------------------------------------------------------------------------
# Parameter construction (deterministic, synthetic).  Weights are pre-padded on the
# contraction dim (mult of 128) and pre-cast to bf16 ONCE, not per forward step.
# ----------------------------------------------------------------------------------
def make_params(key, *, c=3, ps=8, vis_width=768, text_width=128, proj=256,
                vocab=100, max_len=9):
    ks = jax.random.split(key, 10)
    pd = c * ps * ps
    pd_p = _round_up(pd, 128)
    patch_w = 0.02 * jax.random.normal(ks[0], (pd, vis_width), jnp.float32)
    patch_w = jnp.pad(patch_w, ((0, pd_p - pd), (0, 0)))           # K: 192 -> 256
    params = dict(
        patch_embed_w=patch_w.astype(jnp.bfloat16),
        patch_embed_b=jnp.zeros((1, vis_width), jnp.float32),
        cls_token=0.02 * jax.random.normal(ks[1], (1, 1, vis_width), jnp.float32),
        token_emb=0.02 * jax.random.normal(ks[2], (vocab, text_width), jnp.float32),
        pos_emb=0.02 * jax.random.normal(ks[3], (max_len, text_width), jnp.float32),
        text_layer_w=(0.05 * jax.random.normal(ks[4], (text_width, text_width),
                                               jnp.float32)).astype(jnp.bfloat16),
        text_layer_b=jnp.zeros((1, text_width), jnp.float32),
        vision_proj_w=(0.02 * jax.random.normal(ks[5], (vis_width, proj),
                                                jnp.float32)).astype(jnp.bfloat16),
        vision_proj_b=jnp.zeros((1, proj), jnp.float32),
        text_proj_w=(0.02 * jax.random.normal(ks[6], (text_width, proj),
                                              jnp.float32)).astype(jnp.bfloat16),
        text_proj_b=jnp.zeros((1, proj), jnp.float32),
        temp=float(np.clip(0.07, 0.001, 0.5)),     # self.temp.clamp_(0.001, 0.5)
    )
    return params


# ----------------------------------------------------------------------------------
# Forward pass (McgForPretrain.forward, single device)
# ----------------------------------------------------------------------------------
def mcg_forward(params, batch, *, ps=8):
    vis = batch["visual_inputs"].astype(jnp.float32)        # (B, T, C, H, W)
    B, T, C, H, W = vis.shape
    ids = batch["text_input_ids"]                            # (B, L)
    L = ids.shape[1]

    # ---------------- visual encoder surrogate (patchify + Pallas linear + CLS) -----
    # TODO(synk): real visual_encoder (TimeSformer ViT w/ cross attention) is external;
    # replaced by a deterministic patch-embedding so downstream heads are exact.
    npatch = T * (H // ps) * (W // ps)
    patches = vis.reshape(B, T, C, H // ps, ps, W // ps, ps)
    patches = patches.transpose(0, 1, 3, 5, 2, 4, 6).reshape(B * npatch, C * ps * ps)
    patch_tok = pallas_linear(patches, params["patch_embed_w"], params["patch_embed_b"])
    patch_tok = patch_tok.reshape(B, npatch, -1)
    cls_tok = jnp.broadcast_to(params["cls_token"].astype(jnp.bfloat16),
                               (B, 1, patch_tok.shape[-1]))
    video_embeds = jnp.concatenate([cls_tok, patch_tok], axis=1)     # (B, 1+P, 768) bf16

    # ---------------- text encoder surrogate (embedding + Pallas linear layer) ------
    # TODO(synk): real BertModel text encoder / aggregate_tokens wordpiece merging are
    # external; here: embedding lookup + one tanh linear layer (identity aggregation).
    tw = params["token_emb"].shape[1]
    emb = params["token_emb"][ids] + params["pos_emb"][None, :L]
    text_embeds = pallas_linear(emb.reshape(B * L, tw), params["text_layer_w"],
                                params["text_layer_b"], activation="tanh")
    text_embeds = text_embeds.reshape(B, L, tw)                       # bf16

    # ---------------- fused projections + L2 normalize (this module's heads) --------
    # Run vision_proj / text_proj ONCE over all tokens, slice CLS vs the rest after
    # (normalization is per-row, so results are identical to separate calls).
    vproj = pallas_linear(video_embeds.reshape(B * (1 + npatch), -1),
                          params["vision_proj_w"], params["vision_proj_b"],
                          normalize=True).reshape(B, 1 + npatch, -1)       # (B, 1+P, 256)
    tproj = pallas_linear(text_embeds.reshape(B * L, tw),
                          params["text_proj_w"], params["text_proj_b"],
                          normalize=True).reshape(B, L, -1)                # (B, L, 256)
    video_feat = vproj[:, 0, :]
    patch_emb = vproj[:, 1:, :]
    text_feat = tproj[:, 0, :]
    word_emb = tproj[:, 1:, :]

    # ---------------- ITC loss (single device: allgather == identity) ---------------
    itc_loss = pallas_itc_loss(video_feat, text_feat, params["temp"])

    # ---------------- MLM branch -----------------------------------------------------
    # TODO(synk): compute_mlm needs the fusion-mode BertModel + cls head (external);
    # the reference forward returns None when 'mlm_labels' is absent from the batch.
    mlm_logits = mlm_loss = mlm_labels = None

    # ---------------- MCL attention-weight preparation (no_grad, device-side) --------
    pad_mask = (ids[:, 1:] == 0).astype(jnp.float32)                  # '[PAD]' words

    # word attention weights (surrogate for BERT last-layer CLS->token attention)
    wa = jnp.where(pad_mask > 0, -1e9,
                   jax.random.normal(jax.random.PRNGKey(7), (B, L - 1), jnp.float32))
    wa = jax.nn.softmax(wa, axis=1)
    wa = jnp.where(pad_mask > 0, 0.0, wa)
    valid = wa > 0
    lo_w = _masked_quantile(wa, valid, 0.1)                           # quantile over nonzero
    hi_w = _masked_quantile(wa, valid, 0.9)
    wa = jnp.where(valid, jnp.clip(wa, lo_w, hi_w), wa)
    word_w = wa / jnp.sum(wa, axis=1, keepdims=True)

    # patch attention weights (surrogate for visual last-block CLS->patch attention map)
    am = jax.nn.softmax(jax.random.normal(jax.random.PRNGKey(11),
                                          (B, 4, 1 + npatch, 1 + npatch), jnp.float32),
                        axis=-1)
    pa = am[:, :, 0, 1:].mean(axis=1)
    lo_p = jnp.quantile(pa, 0.1, axis=1, keepdims=True)
    hi_p = jnp.quantile(pa, 0.9, axis=1, keepdims=True)
    pa = jnp.clip(pa, lo_p, hi_p)
    patch_w = pa / jnp.sum(pa, axis=1, keepdims=True)

    # ---------------- MCL loss (Pallas kernel, batched over the batch axis) ----------
    mcl_loss = pallas_mcl_loss(word_emb, patch_emb, pad_mask, word_w, patch_w,
                               local_temp=0.1)

    return dict(itc_loss=itc_loss, mlm_scores=mlm_logits, mlm_loss=mlm_loss,
                mlm_labels=mlm_labels, mcl_loss=mcl_loss)


# ----------------------------------------------------------------------------------
if __name__ == "__main__":
    key = jax.random.PRNGKey(0)
    kv, kp = jax.random.split(key)

    B, T, C, H, W = 2, 2, 3, 16, 16
    L = 9   # CLS + 8 word tokens

    visual_inputs = jax.random.normal(kv, (B, T, C, H, W), jnp.float32)
    text_input_ids = jnp.array([[101, 5, 6, 7, 8, 9, 10, 11, 12],
                                [101, 13, 14, 15, 16, 17, 0, 0, 0]], dtype=jnp.int32)
    text_input_mask = (text_input_ids != 0).astype(jnp.int32)
    token_type_ids = jnp.zeros_like(text_input_ids)

    batch = dict(visual_inputs=visual_inputs,
                 text_input_ids=text_input_ids,
                 text_input_mask=text_input_mask,
                 token_type_ids=token_type_ids)

    params = make_params(kp, c=C, ps=8, vis_width=768, text_width=128,
                         proj=256, vocab=128, max_len=L)

    out = mcg_forward(params, batch)
    itc = jax.block_until_ready(out["itc_loss"])
    mcl = jax.block_until_ready(out["mcl_loss"])
    assert np.isfinite(float(itc)) and np.isfinite(float(mcl))
    print("KERNEL_OK")
</pallas_src>

<mosaic_0001>
module attributes {stable_mosaic.version = 11 : i64} {
  func.func @_linear_kernel(%arg0: i32, %arg1: memref<16x256xbf16, #tpu.memory_space<vmem>>, %arg2: memref<256x768xbf16, #tpu.memory_space<vmem>>, %arg3: memref<1x768xf32, #tpu.memory_space<vmem>>, %arg4: memref<16x768xbf16, #tpu.memory_space<vmem>>) attributes {dimension_semantics = [#tpu.dimension_semantics<parallel>], iteration_bounds = array<i64: 1>, scalar_prefetch = 0 : i64, scratch_operands = 0 : i64, tpu.core_type = #tpu.core_type<tc>, window_params = [{transform_indices = @transform_0, window_bounds = array<i64: 16, 256>}, {pipeline_mode = #tpu.pipeline_mode<synchronous>, transform_indices = @transform_1, window_bounds = array<i64: 256, 768>}, {pipeline_mode = #tpu.pipeline_mode<synchronous>, transform_indices = @transform_2, window_bounds = array<i64: 1, 768>}, {transform_indices = @transform_3, window_bounds = array<i64: 16, 768>}]} {
    %c0 = arith.constant 0 : index
    %c0_0 = arith.constant 0 : index
    %0 = vector.load %arg1[%c0, %c0_0] : memref<16x256xbf16, #tpu.memory_space<vmem>>, vector<16x256xbf16>
    %c0_1 = arith.constant 0 : index
    %c0_2 = arith.constant 0 : index
    %1 = vector.load %arg2[%c0_1, %c0_2] : memref<256x768xbf16, #tpu.memory_space<vmem>>, vector<256x768xbf16>
    %cst = arith.constant dense<0.000000e+00> : vector<16x768xf32>
    %2 = tpu.matmul %0, %1, %cst {dimension_numbers = #tpu.dot_dimension_numbers<[1], [0], [0], [1], [0, 0, 1, 1], [], []>} : vector<16x256xbf16>, vector<256x768xbf16>, vector<16x768xf32> -> vector<16x768xf32>
    %c0_3 = arith.constant 0 : index
    %c0_4 = arith.constant 0 : index
    %3 = vector.load %arg3[%c0_3, %c0_4] : memref<1x768xf32, #tpu.memory_space<vmem>>, vector<1x768xf32>
    %4 = vector.broadcast %3 : vector<1x768xf32> to vector<16x768xf32>
    %5 = arith.addf %2, %4 : vector<16x768xf32>
    %6 = arith.truncf %5 : vector<16x768xf32> to vector<16x768xbf16>
    %c0_5 = arith.constant 0 : index
    %c0_6 = arith.constant 0 : index
    %7 = vector.load %arg4[%c0_5, %c0_6] : memref<16x768xbf16, #tpu.memory_space<vmem>>, vector<16x768xbf16>
    tpu.vector_store %arg4[%c0_5, %c0_6], %6 {strides = array<i32>} : memref<16x768xbf16, #tpu.memory_space<vmem>>, vector<16x768xbf16>,
    return
  }
  func.func @transform_0(%arg0: i32) -> (i32, i32) {
    %c0_i32 = arith.constant 0 : i32
    %c0_i32_0 = arith.constant 0 : i32
    return %arg0, %c0_i32 : i32, i32
  }
  func.func @transform_1(%arg0: i32) -> (i32, i32) {
    %c0_i32 = arith.constant 0 : i32
    %c0_i32_0 = arith.constant 0 : i32
    %c0_i32_1 = arith.constant 0 : i32
    return %c0_i32, %c0_i32_0 : i32, i32
  }
  func.func @transform_2(%arg0: i32) -> (i32, i32) {
    %c0_i32 = arith.constant 0 : i32
    %c0_i32_0 = arith.constant 0 : i32
    %c0_i32_1 = arith.constant 0 : i32
    return %c0_i32, %c0_i32_0 : i32, i32
  }
  func.func @transform_3(%arg0: i32) -> (i32, i32) {
    %c0_i32 = arith.constant 0 : i32
    %c0_i32_0 = arith.constant 0 : i32
    return %arg0, %c0_i32 : i32, i32
  }
}

</mosaic_0001>

<llo_original>
// kernel: tpu_custom_call.1
$region0: #{tpu_custom_call.1}
  #allocation0 [shape = 'u32[]', space=smem, size = 0x4, offset = 0x4, fixed_abs, tag = 'smem constant byte address 0x4 - core index']
  #allocation1 [shape = 'u32[144,128]{1,0:T(1,128)}', space=vmem, size = 0x12000, scoped, tag = 'internal scratch']
  %s0 = inlined_call_operand.hbm [shape: bf16[16,256], index: 0, kind: input, shape index: {}]
  %s1 = inlined_call_operand.hbm [shape: bf16[256,768], index: 1, kind: input, shape index: {}]
  %s2 = inlined_call_operand.hbm [shape: f32[1,768], index: 2, kind: input, shape index: {}]
  %s3 = inlined_call_operand.hbm [shape: bf16[16,768], index: 3, kind: output, shape index: {}]
  %s4 = sld [smem:[#allocation0]]
  $region34: #{tpu_custom_call.1} parent=0
    _
  %s6 = ssub.s32 1, %s4
  %s7 = scalar_select 0, %s6, %s4
  $region1: #{tpu_custom_call.1} parent=0
    #allocation2 [shape = 'u8[8192]{0}', space=vmem, size = 0x2000, scoped, tag = 'input window, operand 0, single buffered']
    #allocation3 [shape = 's32[1]{0}', space=sflag, size = 0x4, scoped, tag = 'scoped memory for tpu_custom_call.1']
    #allocation4 [shape = 's32[1]{0}', space=sflag, size = 0x4, scoped, tag = 'scoped memory for tpu_custom_call.1']
    #allocation5 [shape = 'u8[393216]{0}', space=vmem, size = 0x60000, scoped, tag = 'input window, operand 1, single buffered']
    #allocation6 [shape = 's32[1]{0}', space=sflag, size = 0x4, scoped, tag = 'scoped memory for tpu_custom_call.1']
    #allocation7 [shape = 'u8[3072]{0}', space=vmem, size = 0xc00, scoped, tag = 'input window, operand 2, single buffered']
    #allocation8 [shape = 'u8[24576]{0}', space=vmem, size = 0x6000, scoped, tag = 'output window, operand 0, single buffered']
    %8 = vsyncpa [#allocation3], 0
    %9 = vsyncpa [#allocation6], 0
    %10 = vsyncpa [#allocation4], 0
    // Predicated region
    $region2: #{tpu_custom_call.1} parent=1 // pred_check
      _
    $region3: #{tpu_custom_call.1} parent=1 // pred_check_branch
      %12 = sbr.rel (0) target = $region5
    $region4: #{tpu_custom_call.1} parent=1 // pred_region
      %s14 = ssub.s32 256, 256
      %15 = vsyncadd [#allocation3], %s14
      %s16 = sshll.u32 [#allocation2], 4
      %s17 = int_to_ptr.vmem [resolvable:$true] %s16
      %22 = dma.hbm_to_vmem [thread:$0]  %s0, 256, %s17, [#allocation3], 128, 128, 8
    $region5: #{tpu_custom_call.1} parent=1 // pred_fallthru
      _
    // Predicated region
    $region6: #{tpu_custom_call.1} parent=1 // pred_check
      _
    $region7: #{tpu_custom_call.1} parent=1 // pred_check_branch
      %24 = sbr.rel (0) target = $region9
    $region8: #{tpu_custom_call.1} parent=1 // pred_region
      %s26 = ssub.s32 12288, 12288
      %27 = vsyncadd [#allocation6], %s26
      %s28 = sshll.u32 [#allocation5], 4
      %s29 = int_to_ptr.vmem [resolvable:$true] %s28
      %34 = dma.hbm_to_vmem [thread:$0]  %s1, 12288, %s29, [#allocation6], 384, 384, 24
    $region9: #{tpu_custom_call.1} parent=1 // pred_fallthru
      _
    // Predicated region
    $region10: #{tpu_custom_call.1} parent=1 // pred_check
      _
    $region11: #{tpu_custom_call.1} parent=1 // pred_check_branch
      %36 = sbr.rel (0) target = $region13
    $region12: #{tpu_custom_call.1} parent=1 // pred_region
      %s38 = ssub.s32 96, 96
      %39 = vsyncadd [#allocation6], %s38
      %s41 = sshll.u32 [#allocation7], 4
      %s42 = int_to_ptr.vmem [resolvable:$true] %s41
      %44 = dma.hbm_to_vmem [thread:$0]  %s2, 96, %s42, [#allocation6]
    $region13: #{tpu_custom_call.1} parent=1 // pred_fallthru
      _
    // Predicated region
    $region14: #{tpu_custom_call.1} parent=1 // pred_check
      _
    $region15: #{tpu_custom_call.1} parent=1 // pred_check_branch
      %46 = sbr.rel (0) target = $region17
    $region16: #{tpu_custom_call.1} parent=1 // pred_region
      %47 = dma.done [#allocation3], 256
    $region17: #{tpu_custom_call.1} parent=1 // pred_fallthru
      _
    // Predicated region
    $region18: #{tpu_custom_call.1} parent=1 // pred_check
      _
    $region19: #{tpu_custom_call.1} parent=1 // pred_check_branch
      %49 = sbr.rel (0) target = $region21
    $region20: #{tpu_custom_call.1} parent=1 // pred_region
      %50 = dma.done [#allocation6], 12288
    $region21: #{tpu_custom_call.1} parent=1 // pred_fallthru
      _
    // Predicated region
    $region22: #{tpu_custom_call.1} parent=1 // pred_check
      _
    $region23: #{tpu_custom_call.1} parent=1 // pred_check_branch
      %52 = sbr.rel (0) target = $region25
    $region24: #{tpu_custom_call.1} parent=1 // pred_region
      %53 = dma.done [#allocation6], 96
    $region25: #{tpu_custom_call.1} parent=1 // pred_fallthru
      _
    %v54 = vld [vmem:[#allocation2] sm:$0xff]
    %v55 = vld [vmem:[#allocation2 + $0x8] sm:$0xff]
    %v56 = vld [vmem:[#allocation5] sm:$0xff]
    %v57 = vld [vmem:[#allocation5 + $0x8] sm:$0xff]
    %v58 = vld [vmem:[#allocation5 + $0x10] sm:$0xff]
    %v59 = vld [vmem:[#allocation5 + $0x18] sm:$0xff]
    %v60 = vld [vmem:[#allocation5 + $0x20] sm:$0xff]
    %v61 = vld [vmem:[#allocation5 + $0x28] sm:$0xff]
    %v62 = vld [vmem:[#allocation5 + $0x30] sm:$0xff]
    %v63 = vld [vmem:[#allocation5 + $0x38] sm:$0xff]
    %v64 = vld [vmem:[#allocation5 + $0x40] sm:$0xff]
    %v65 = vld [vmem:[#allocation5 + $0x48] sm:$0xff]
    %v66 = vld [vmem:[#allocation5 + $0x50] sm:$0xff]
    %v67 = vld [vmem:[#allocation5 + $0x58] sm:$0xff]
    %v68 = vld [vmem:[#allocation5 + $0x60] sm:$0xff]
    %v69 = vld [vmem:[#allocation5 + $0x68] sm:$0xff]
    %v70 = vld [vmem:[#allocation5 + $0x70] sm:$0xff]
    %v71 = vld [vmem:[#allocation5 + $0x78] sm:$0xff]
    %v72 = vld [vmem:[#allocation5 + $0x80] sm:$0xff]
    %v73 = vld [vmem:[#allocation5 + $0x88] sm:$0xff]
    %v74 = vld [vmem:[#allocation5 + $0x90] sm:$0xff]
    %v75 = vld [vmem:[#allocation5 + $0x98] sm:$0xff]
    %v76 = vld [vmem:[#allocation5 + $0xa0] sm:$0xff]
    %v77 = vld [vmem:[#allocation5 + $0xa8] sm:$0xff]
    %v78 = vld [vmem:[#allocation5 + $0xb0] sm:$0xff]
    %v79 = vld [vmem:[#allocation5 + $0xb8] sm:$0xff]
    %v80 = vld [vmem:[#allocation5 + $0xc0] sm:$0xff]
    %v81 = vld [vmem:[#allocation5 + $0xc8] sm:$0xff]
    %v82 = vld [vmem:[#allocation5 + $0xd0] sm:$0xff]
    %v83 = vld [vmem:[#allocation5 + $0xd8] sm:$0xff]
    %v84 = vld [vmem:[#allocation5 + $0xe0] sm:$0xff]
    %v85 = vld [vmem:[#allocation5 + $0xe8] sm:$0xff]
    %v86 = vld [vmem:[#allocation5 + $0xf0] sm:$0xff]
    %v87 = vld [vmem:[#allocation5 + $0xf8] sm:$0xff]
    %v88 = vld [vmem:[#allocation5 + $0x100] sm:$0xff]
    %v89 = vld [vmem:[#allocation5 + $0x108] sm:$0xff]
    %v90 = vld [vmem:[#allocation5 + $0x110] sm:$0xff]
    %v91 = vld [vmem:[#allocation5 + $0x118] sm:$0xff]
    %v92 = vld [vmem:[#allocation5 + $0x120] sm:$0xff]
    %v93 = vld [vmem:[#allocation5 + $0x128] sm:$0xff]
    %v94 = vld [vmem:[#allocation5 + $0x130] sm:$0xff]
    %v95 = vld [vmem:[#allocation5 + $0x138] sm:$0xff]
    %v96 = vld [vmem:[#allocation5 + $0x140] sm:$0xff]
    %v97 = vld [vmem:[#allocation5 + $0x148] sm:$0xff]
    %v98 = vld [vmem:[#allocation5 + $0x150] sm:$0xff]
    %v99 = vld [vmem:[#allocation5 + $0x158] sm:$0xff]
    %v100 = vld [vmem:[#allocation5 + $0x160] sm:$0xff]
    %v101 = vld [vmem:[#allocation5 + $0x168] sm:$0xff]
    %v102 = vld [vmem:[#allocation5 + $0x170] sm:$0xff]
    %v103 = vld [vmem:[#allocation5 + $0x178] sm:$0xff]
    %v104 = vld [vmem:[#allocation5 + $0x180] sm:$0xff]
    %v105 = vld [vmem:[#allocation5 + $0x188] sm:$0xff]
    %v106 = vld [vmem:[#allocation5 + $0x190] sm:$0xff]
    %v107 = vld [vmem:[#allocation5 + $0x198] sm:$0xff]
    %v108 = vld [vmem:[#allocation5 + $0x1a0] sm:$0xff]
    %v109 = vld [vmem:[#allocation5 + $0x1a8] sm:$0xff]
    %v110 = vld [vmem:[#allocation5 + $0x1b0] sm:$0xff]
    %v111 = vld [vmem:[#allocation5 + $0x1b8] sm:$0xff]
    %v112 = vld [vmem:[#allocation5 + $0x1c0] sm:$0xff]
    %v113 = vld [vmem:[#allocation5 + $0x1c8] sm:$0xff]
    %v114 = vld [vmem:[#allocation5 + $0x1d0] sm:$0xff]
    %v115 = vld [vmem:[#allocation5 + $0x1d8] sm:$0xff]
    %v116 = vld [vmem:[#allocation5 + $0x1e0] sm:$0xff]
    %v117 = vld [vmem:[#allocation5 + $0x1e8] sm:$0xff]
    %v118 = vld [vmem:[#allocation5 + $0x1f0] sm:$0xff]
    %v119 = vld [vmem:[#allocation5 + $0x1f8] sm:$0xff]
    %v120 = vld [vmem:[#allocation5 + $0x200] sm:$0xff]
    %v121 = vld [vmem:[#allocation5 + $0x208] sm:$0xff]
    %v122 = vld [vmem:[#allocation5 + $0x210] sm:$0xff]
    %v123 = vld [vmem:[#allocation5 + $0x218] sm:$0xff]
    %v124 = vld [vmem:[#allocation5 + $0x220] sm:$0xff]
    %v125 = vld [vmem:[#allocation5 + $0x228] sm:$0xff]
    %v126 = vld [vmem:[#allocation5 + $0x230] sm:$0xff]
    %v127 = vld [vmem:[#allocation5 + $0x238] sm:$0xff]
    %v128 = vld [vmem:[#allocation5 + $0x240] sm:$0xff]
    %v129 = vld [vmem:[#allocation5 + $0x248] sm:$0xff]
    %v130 = vld [vmem:[#allocation5 + $0x250] sm:$0xff]
    %v131 = vld [vmem:[#allocation5 + $0x258] sm:$0xff]
    %v132 = vld [vmem:[#allocation5 + $0x260] sm:$0xff]
    %v133 = vld [vmem:[#allocation5 + $0x268] sm:$0xff]
    %v134 = vld [vmem:[#allocation5 + $0x270] sm:$0xff]
    %v135 = vld [vmem:[#allocation5 + $0x278] sm:$0xff]
    %v136 = vld [vmem:[#allocation5 + $0x280] sm:$0xff]
    %v137 = vld [vmem:[#allocation5 + $0x288] sm:$0xff]
    %v138 = vld [vmem:[#allocation5 + $0x290] sm:$0xff]
    %v139 = vld [vmem:[#allocation5 + $0x298] sm:$0xff]
    %v140 = vld [vmem:[#allocation5 + $0x2a0] sm:$0xff]
    %v141 = vld [vmem:[#allocation5 + $0x2a8] sm:$0xff]
    %v142 = vld [vmem:[#allocation5 + $0x2b0] sm:$0xff]
    %v143 = vld [vmem:[#allocation5 + $0x2b8] sm:$0xff]
    %v144 = vld [vmem:[#allocation5 + $0x2c0] sm:$0xff]
    %v145 = vld [vmem:[#allocation5 + $0x2c8] sm:$0xff]
    %v146 = vld [vmem:[#allocation5 + $0x2d0] sm:$0xff]
    %v147 = vld [vmem:[#allocation5 + $0x2d8] sm:$0xff]
    %v148 = vld [vmem:[#allocation5 + $0x2e0] sm:$0xff]
    %v149 = vld [vmem:[#allocation5 + $0x2e8] sm:$0xff]
    %v150 = vld [vmem:[#allocation5 + $0x2f0] sm:$0xff]
    %v151 = vld [vmem:[#allocation5 + $0x2f8] sm:$0xff]
    %v152 = vld [vmem:[#allocation7] sm:$0x3f]
    %v154 = vlaneseq
    %v155 = vshrl.u32 %v154, 7
    %v156 = vsub.s32 0, %v155
    %v157 = vrot.slane %v152, %v156
    %v158 = vlaneseq
    %v159 = vshrl.u32 %v158, 7
    %v160 = vsub.s32 1, %v159
    %v161 = vrot.slane %v152, %v160
    %v162 = vlaneseq
    %v163 = vshrl.u32 %v162, 7
    %v164 = vsub.s32 2, %v163
    %v165 = vrot.slane %v152, %v164
    %v166 = vlaneseq
    %v167 = vshrl.u32 %v166, 7
    %v168 = vsub.s32 3, %v167
    %v169 = vrot.slane %v152, %v168
    %v170 = vlaneseq
    %v171 = vshrl.u32 %v170, 7
    %v172 = vsub.s32 4, %v171
    %v173 = vrot.slane %v152, %v172
    %v174 = vlaneseq
    %v175 = vshrl.u32 %v174, 7
    %v176 = vsub.s32 5, %v175
    %v177 = vrot.slane %v152, %v176
    %v186 = vunpack.c.l.b16 %v54
    %v187 = vunpack.c.h.b16 %v54
    %v188 = vunpack.c.l.b16 %v55
    %v189 = vunpack.c.h.b16 %v55
    %v190 = vpack.c.b16 %v188, %v186
    %v191 = vpack.c.b16 %v189, %v187
    %v290 = vunpack.c.l.b16 %v56
    %v291 = vunpack.c.h.b16 %v56
    %v292 = vunpack.c.l.b16 %v57
    %v293 = vunpack.c.h.b16 %v57
    %v294 = vunpack.c.l.b16 %v58
    %v295 = vunpack.c.h.b16 %v58
    %v296 = vunpack.c.l.b16 %v59
    %v297 = vunpack.c.h.b16 %v59
    %v298 = vunpack.c.l.b16 %v60
    %v299 = vunpack.c.h.b16 %v60
    %v300 = vunpack.c.l.b16 %v61
    %v301 = vunpack.c.h.b16 %v61
    %v302 = vunpack.c.l.b16 %v62
    %v303 = vunpack.c.h.b16 %v62
    %v304 = vunpack.c.l.b16 %v63
    %v305 = vunpack.c.h.b16 %v63
    %v306 = vunpack.c.l.b16 %v64
    %v307 = vunpack.c.h.b16 %v64
    %v308 = vunpack.c.l.b16 %v65
    %v309 = vunpack.c.h.b16 %v65
    %v310 = vunpack.c.l.b16 %v66
    %v311 = vunpack.c.h.b16 %v66
    %v312 = vunpack.c.l.b16 %v67
    %v313 = vunpack.c.h.b16 %v67
    %v314 = vunpack.c.l.b16 %v68
    %v315 = vunpack.c.h.b16 %v68
    %v316 = vunpack.c.l.b16 %v69
    %v317 = vunpack.c.h.b16 %v69
    %v318 = vunpack.c.l.b16 %v70
    %v319 = vunpack.c.h.b16 %v70
    %v320 = vunpack.c.l.b16 %v71
    %v321 = vunpack.c.h.b16 %v71
    %v322 = vunpack.c.l.b16 %v72
    %v323 = vunpack.c.h.b16 %v72
    %v324 = vunpack.c.l.b16 %v73
    %v325 = vunpack.c.h.b16 %v73
    %v326 = vunpack.c.l.b16 %v74
    %v327 = vunpack.c.h.b16 %v74
    %v328 = vunpack.c.l.b16 %v75
    %v329 = vunpack.c.h.b16 %v75
    %v330 = vunpack.c.l.b16 %v76
    %v331 = vunpack.c.h.b16 %v76
    %v332 = vunpack.c.l.b16 %v77
    %v333 = vunpack.c.h.b16 %v77
    %v334 = vunpack.c.l.b16 %v78
    %v335 = vunpack.c.h.b16 %v78
    %v336 = vunpack.c.l.b16 %v79
    %v337 = vunpack.c.h.b16 %v79
    %v338 = vunpack.c.l.b16 %v80
    %v339 = vunpack.c.h.b16 %v80
    %v340 = vunpack.c.l.b16 %v81
    %v341 = vunpack.c.h.b16 %v81
    %v342 = vunpack.c.l.b16 %v82
    %v343 = vunpack.c.h.b16 %v82
    %v344 = vunpack.c.l.b16 %v83
    %v345 = vunpack.c.h.b16 %v83
    %v346 = vunpack.c.l.b16 %v84
    %v347 = vunpack.c.h.b16 %v84
    %v348 = vunpack.c.l.b16 %v85
    %v349 = vunpack.c.h.b16 %v85
    %v350 = vunpack.c.l.b16 %v86
    %v351 = vunpack.c.h.b16 %v86
    %v352 = vunpack.c.l.b16 %v87
    %v353 = vunpack.c.h.b16 %v87
    %v354 = vunpack.c.l.b16 %v88
    %v355 = vunpack.c.h.b16 %v88
    %v356 = vunpack.c.l.b16 %v89
    %v357 = vunpack.c.h.b16 %v89
    %v358 = vunpack.c.l.b16 %v90
    %v359 = vunpack.c.h.b16 %v90
    %v360 = vunpack.c.l.b16 %v91
    %v361 = vunpack.c.h.b16 %v91
    %v362 = vunpack.c.l.b16 %v92
    %v363 = vunpack.c.h.b16 %v92
    %v364 = vunpack.c.l.b16 %v93
    %v365 = vunpack.c.h.b16 %v93
    %v366 = vunpack.c.l.b16 %v94
    %v367 = vunpack.c.h.b16 %v94
    %v368 = vunpack.c.l.b16 %v95
    %v369 = vunpack.c.h.b16 %v95
    %v370 = vunpack.c.l.b16 %v96
    %v371 = vunpack.c.h.b16 %v96
    %v372 = vunpack.c.l.b16 %v97
    %v373 = vunpack.c.h.b16 %v97
    %v374 = vunpack.c.l.b16 %v98
    %v375 = vunpack.c.h.b16 %v98
    %v376 = vunpack.c.l.b16 %v99
    %v377 = vunpack.c.h.b16 %v99
    %v378 = vunpack.c.l.b16 %v100
    %v379 = vunpack.c.h.b16 %v100
    %v380 = vunpack.c.l.b16 %v101
    %v381 = vunpack.c.h.b16 %v101
    %v382 = vunpack.c.l.b16 %v102
    %v383 = vunpack.c.h.b16 %v102
    %v384 = vunpack.c.l.b16 %v103
    %v385 = vunpack.c.h.b16 %v103
    %v386 = vunpack.c.l.b16 %v104
    %v387 = vunpack.c.h.b16 %v104
    %v388 = vunpack.c.l.b16 %v105
    %v389 = vunpack.c.h.b16 %v105
    %v390 = vunpack.c.l.b16 %v106
    %v391 = vunpack.c.h.b16 %v106
    %v392 = vunpack.c.l.b16 %v107
    %v393 = vunpack.c.h.b16 %v107
    %v394 = vunpack.c.l.b16 %v108
    %v395 = vunpack.c.h.b16 %v108
    %v396 = vunpack.c.l.b16 %v109
    %v397 = vunpack.c.h.b16 %v109
    %v398 = vunpack.c.l.b16 %v110
    %v399 = vunpack.c.h.b16 %v110
    %v400 = vunpack.c.l.b16 %v111
    %v401 = vunpack.c.h.b16 %v111
    %v402 = vunpack.c.l.b16 %v112
    %v403 = vunpack.c.h.b16 %v112
    %v404 = vunpack.c.l.b16 %v113
    %v405 = vunpack.c.h.b16 %v113
    %v406 = vunpack.c.l.b16 %v114
    %v407 = vunpack.c.h.b16 %v114
    %v408 = vunpack.c.l.b16 %v115
    %v409 = vunpack.c.h.b16 %v115
    %v410 = vunpack.c.l.b16 %v116
    %v411 = vunpack.c.h.b16 %v116
    %v412 = vunpack.c.l.b16 %v117
    %v413 = vunpack.c.h.b16 %v117
    %v414 = vunpack.c.l.b16 %v118
    %v415 = vunpack.c.h.b16 %v118
    %v416 = vunpack.c.l.b16 %v119
    %v417 = vunpack.c.h.b16 %v119
    %v418 = vunpack.c.l.b16 %v120
    %v419 = vunpack.c.h.b16 %v120
    %v420 = vunpack.c.l.b16 %v121
    %v421 = vunpack.c.h.b16 %v121
    %v422 = vunpack.c.l.b16 %v122
    %v423 = vunpack.c.h.b16 %v122
    %v424 = vunpack.c.l.b16 %v123
    %v425 = vunpack.c.h.b16 %v123
    %v426 = vunpack.c.l.b16 %v124
    %v427 = vunpack.c.h.b16 %v124
    %v428 = vunpack.c.l.b16 %v125
    %v429 = vunpack.c.h.b16 %v125
    %v430 = vunpack.c.l.b16 %v126
    %v431 = vunpack.c.h.b16 %v126
    %v432 = vunpack.c.l.b16 %v127
    %v433 = vunpack.c.h.b16 %v127
    %v434 = vunpack.c.l.b16 %v128
    %v435 = vunpack.c.h.b16 %v128
    %v436 = vunpack.c.l.b16 %v129
    %v437 = vunpack.c.h.b16 %v129
    %v438 = vunpack.c.l.b16 %v130
    %v439 = vunpack.c.h.b16 %v130
    %v440 = vunpack.c.l.b16 %v131
    %v441 = vunpack.c.h.b16 %v131
    %v442 = vunpack.c.l.b16 %v132
    %v443 = vunpack.c.h.b16 %v132
    %v444 = vunpack.c.l.b16 %v133
    %v445 = vunpack.c.h.b16 %v133
    %v446 = vunpack.c.l.b16 %v134
    %v447 = vunpack.c.h.b16 %v134
    %v448 = vunpack.c.l.b16 %v135
    %v449 = vunpack.c.h.b16 %v135
    %v450 = vunpack.c.l.b16 %v136
    %v451 = vunpack.c.h.b16 %v136
    %v452 = vunpack.c.l.b16 %v137
    %v453 = vunpack.c.h.b16 %v137
    %v454 = vunpack.c.l.b16 %v138
    %v455 = vunpack.c.h.b16 %v138
    %v456 = vunpack.c.l.b16 %v139
    %v457 = vunpack.c.h.b16 %v139
    %v458 = vunpack.c.l.b16 %v140
    %v459 = vunpack.c.h.b16 %v140
    %v460 = vunpack.c.l.b16 %v141
    %v461 = vunpack.c.h.b16 %v141
    %v462 = vunpack.c.l.b16 %v142
    %v463 = vunpack.c.h.b16 %v142
    %v464 = vunpack.c.l.b16 %v143
    %v465 = vunpack.c.h.b16 %v143
    %v466 = vunpack.c.l.b16 %v144
    %v467 = vunpack.c.h.b16 %v144
    %v468 = vunpack.c.l.b16 %v145
    %v469 = vunpack.c.h.b16 %v145
    %v470 = vunpack.c.l.b16 %v146
    %v471 = vunpack.c.h.b16 %v146
    %v472 = vunpack.c.l.b16 %v147
    %v473 = vunpack.c.h.b16 %v147
    %v474 = vunpack.c.l.b16 %v148
    %v475 = vunpack.c.h.b16 %v148
    %v476 = vunpack.c.l.b16 %v149
    %v477 = vunpack.c.h.b16 %v149
    %v478 = vunpack.c.l.b16 %v150
    %v479 = vunpack.c.h.b16 %v150
    %v480 = vunpack.c.l.b16 %v151
    %v481 = vunpack.c.h.b16 %v151
    %v482 = vpack.c.b16 %v296, %v290
    %v483 = vpack.c.b16 %v297, %v291
    %v484 = vpack.c.b16 %v298, %v292
    %v485 = vpack.c.b16 %v299, %v293
    %v486 = vpack.c.b16 %v300, %v294
    %v487 = vpack.c.b16 %v301, %v295
    %v488 = vpack.c.b16 %v308, %v302
    %v489 = vpack.c.b16 %v309, %v303
    %v490 = vpack.c.b16 %v310, %v304
    %v491 = vpack.c.b16 %v311, %v305
    %v492 = vpack.c.b16 %v312, %v306
    %v493 = vpack.c.b16 %v313, %v307
    %v494 = vpack.c.b16 %v320, %v314
    %v495 = vpack.c.b16 %v321, %v315
    %v496 = vpack.c.b16 %v322, %v316
    %v497 = vpack.c.b16 %v323, %v317
    %v498 = vpack.c.b16 %v324, %v318
    %v499 = vpack.c.b16 %v325, %v319
    %v500 = vpack.c.b16 %v332, %v326
    %v501 = vpack.c.b16 %v333, %v327
    %v502 = vpack.c.b16 %v334, %v328
    %v503 = vpack.c.b16 %v335, %v329
    %v504 = vpack.c.b16 %v336, %v330
    %v505 = vpack.c.b16 %v337, %v331
    %v506 = vpack.c.b16 %v344, %v338
    %v507 = vpack.c.b16 %v345, %v339
    %v508 = vpack.c.b16 %v346, %v340
    %v509 = vpack.c.b16 %v347, %v341
    %v510 = vpack.c.b16 %v348, %v342
    %v511 = vpack.c.b16 %v349, %v343
    %v512 = vpack.c.b16 %v356, %v350
    %v513 = vpack.c.b16 %v357, %v351
    %v514 = vpack.c.b16 %v358, %v352
    %v515 = vpack.c.b16 %v359, %v353
    %v516 = vpack.c.b16 %v360, %v354
    %v517 = vpack.c.b16 %v361, %v355
    %v518 = vpack.c.b16 %v368, %v362
    %v519 = vpack.c.b16 %v369, %v363
    %v520 = vpack.c.b16 %v370, %v364
    %v521 = vpack.c.b16 %v371, %v365
    %v522 = vpack.c.b16 %v372, %v366
    %v523 = vpack.c.b16 %v373, %v367
    %v524 = vpack.c.b16 %v380, %v374
    %v525 = vpack.c.b16 %v381, %v375
    %v526 = vpack.c.b16 %v382, %v376
    %v527 = vpack.c.b16 %v383, %v377
    %v528 = vpack.c.b16 %v384, %v378
    %v529 = vpack.c.b16 %v385, %v379
    %v530 = vpack.c.b16 %v392, %v386
    %v531 = vpack.c.b16 %v393, %v387
    %v532 = vpack.c.b16 %v394, %v388
    %v533 = vpack.c.b16 %v395, %v389
    %v534 = vpack.c.b16 %v396, %v390
    %v535 = vpack.c.b16 %v397, %v391
    %v536 = vpack.c.b16 %v404, %v398
    %v537 = vpack.c.b16 %v405, %v399
    %v538 = vpack.c.b16 %v406, %v400
    %v539 = vpack.c.b16 %v407, %v401
    %v540 = vpack.c.b16 %v408, %v402
    %v541 = vpack.c.b16 %v409, %v403
    %v542 = vpack.c.b16 %v416, %v410
    %v543 = vpack.c.b16 %v417, %v411
    %v544 = vpack.c.b16 %v418, %v412
    %v545 = vpack.c.b16 %v419, %v413
    %v546 = vpack.c.b16 %v420, %v414
    %v547 = vpack.c.b16 %v421, %v415
    %v548 = vpack.c.b16 %v428, %v422
    %v549 = vpack.c.b16 %v429, %v423
    %v550 = vpack.c.b16 %v430, %v424
    %v551 = vpack.c.b16 %v431, %v425
    %v552 = vpack.c.b16 %v432, %v426
    %v553 = vpack.c.b16 %v433, %v427
    %v554 = vpack.c.b16 %v440, %v434
    %v555 = vpack.c.b16 %v441, %v435
    %v556 = vpack.c.b16 %v442, %v436
    %v557 = vpack.c.b16 %v443, %v437
    %v558 = vpack.c.b16 %v444, %v438
    %v559 = vpack.c.b16 %v445, %v439
    %v560 = vpack.c.b16 %v452, %v446
    %v561 = vpack.c.b16 %v453, %v447
    %v562 = vpack.c.b16 %v454, %v448
    %v563 = vpack.c.b16 %v455, %v449
    %v564 = vpack.c.b16 %v456, %v450
    %v565 = vpack.c.b16 %v457, %v451
    %v566 = vpack.c.b16 %v464, %v458
    %v567 = vpack.c.b16 %v465, %v459
    %v568 = vpack.c.b16 %v466, %v460
    %v569 = vpack.c.b16 %v467, %v461
    %v570 = vpack.c.b16 %v468, %v462
    %v571 = vpack.c.b16 %v469, %v463
    %v572 = vpack.c.b16 %v476, %v470
    %v573 = vpack.c.b16 %v477, %v471
    %v574 = vpack.c.b16 %v478, %v472
    %v575 = vpack.c.b16 %v479, %v473
    %v576 = vpack.c.b16 %v480, %v474
    %v577 = vpack.c.b16 %v481, %v475
    %674 = vmatprep.subr.bf16.mxu0 %v525
    %675 = vmatpush1.bf16.msra.mxu0 %v524
    %676 = vmatprep.subr.bf16.mxu0 %v519
    %677 = vmatpush1.bf16.msra.mxu0 %v518
    %678 = vmatprep.subr.bf16.mxu0 %v513
    %679 = vmatpush1.bf16.msra.mxu0 %v512
    %680 = vmatprep.subr.bf16.mxu0 %v507
    %681 = vmatpush1.bf16.msra.mxu0 %v506
    %682 = vmatprep.subr.bf16.mxu0 %v501
    %683 = vmatpush1.bf16.msra.mxu0 %v500
    %684 = vmatprep.subr.bf16.mxu0 %v495
    %685 = vmatpush1.bf16.msra.mxu0 %v494
    %686 = vmatprep.subr.bf16.mxu0 %v489
    %687 = vmatpush1.bf16.msra.mxu0 %v488
    %688 = vmatprep.subr.bf16.mxu0 %v483
    %689 = vmatpush1.bf16.msra.mxu0 %v482
    %690 = vmatprep.subr.bf16.mxu0 %v573
    %691 = vmatpush2.bf16.msra.mxu0 %v572
    %692 = vmatprep.subr.bf16.mxu0 %v567
    %693 = vmatpush2.bf16.msra.mxu0 %v566
    %694 = vmatprep.subr.bf16.mxu0 %v561
    %695 = vmatpush2.bf16.msra.mxu0 %v560
    %696 = vmatprep.subr.bf16.mxu0 %v555
    %697 = vmatpush2.bf16.msra.mxu0 %v554
    %698 = vmatprep.subr.bf16.mxu0 %v549
    %699 = vmatpush2.bf16.msra.mxu0 %v548
    %700 = vmatprep.subr.bf16.mxu0 %v543
    %701 = vmatpush2.bf16.msra.mxu0 %v542
    %702 = vmatprep.subr.bf16.mxu0 %v537
    %703 = vmatpush2.bf16.msra.mxu0 %v536
    %704 = vmatprep.subr.bf16.mxu0 %v531
    %705 = vmatpush2.bf16.msra.mxu0 %v530
    %706 = vmatprep.mubr.bf16.mxu0 %v191
    %707 = vmatmul.mubr.bf16.gmra.mxu0 %v190
    %v708 = vpop.f32.mrf.mxu0
    %v709 = vadd.f32 %v157, %v708
    %v710 = vpop.f32.mrf.mxu0
    %v711 = vadd.f32 %v161, %v710
    %v712 = vpop.f32.mrf.mxu0
    %v713 = vadd.f32 %v157, %v712
    %v714 = vpop.f32.mrf.mxu0
    %v715 = vadd.f32 %v161, %v714
    %716 = vdwg.mxu0
    %717 = vmatprep.subr.bf16.mxu0 %v527
    %718 = vmatpush1.bf16.msra.mxu0 %v526
    %719 = vmatprep.subr.bf16.mxu0 %v521
    %720 = vmatpush1.bf16.msra.mxu0 %v520
    %721 = vmatprep.subr.bf16.mxu0 %v515
    %722 = vmatpush1.bf16.msra.mxu0 %v514
    %723 = vmatprep.subr.bf16.mxu0 %v509
    %724 = vmatpush1.bf16.msra.mxu0 %v508
    %725 = vmatprep.subr.bf16.mxu0 %v503
    %726 = vmatpush1.bf16.msra.mxu0 %v502
    %727 = vmatprep.subr.bf16.mxu0 %v497
    %728 = vmatpush1.bf16.msra.mxu0 %v496
    %729 = vmatprep.subr.bf16.mxu0 %v491
    %730 = vmatpush1.bf16.msra.mxu0 %v490
    %731 = vmatprep.subr.bf16.mxu0 %v485
    %732 = vmatpush1.bf16.msra.mxu0 %v484
    %733 = vmatprep.subr.bf16.mxu0 %v575
    %734 = vmatpush2.bf16.msra.mxu0 %v574
    %735 = vmatprep.subr.bf16.mxu0 %v569
    %736 = vmatpush2.bf16.msra.mxu0 %v568
    %737 = vmatprep.subr.bf16.mxu0 %v563
    %738 = vmatpush2.bf16.msra.mxu0 %v562
    %739 = vmatprep.subr.bf16.mxu0 %v557
    %740 = vmatpush2.bf16.msra.mxu0 %v556
    %741 = vmatprep.subr.bf16.mxu0 %v551
    %742 = vmatpush2.bf16.msra.mxu0 %v550
    %743 = vmatprep.subr.bf16.mxu0 %v545
    %744 = vmatpush2.bf16.msra.mxu0 %v544
    %745 = vmatprep.subr.bf16.mxu0 %v539
    %746 = vmatpush2.bf16.msra.mxu0 %v538
    %747 = vmatprep.subr.bf16.mxu0 %v533
    %748 = vmatpush2.bf16.msra.mxu0 %v532
    %749 = vmatprep.mubr.bf16.mxu0 %v191
    %750 = vmatmul.mubr.bf16.gmra.mxu0 %v190
    %v751 = vpop.f32.mrf.mxu0
    %v752 = vadd.f32 %v165, %v751
    %v753 = vpop.f32.mrf.mxu0
    %v754 = vadd.f32 %v169, %v753
    %v755 = vpop.f32.mrf.mxu0
    %v756 = vadd.f32 %v165, %v755
    %v757 = vpop.f32.mrf.mxu0
    %v758 = vadd.f32 %v169, %v757
    %759 = vdwg.mxu0
    %760 = vmatprep.subr.bf16.mxu0 %v529
    %761 = vmatpush1.bf16.msra.mxu0 %v528
    %762 = vmatprep.subr.bf16.mxu0 %v523
    %763 = vmatpush1.bf16.msra.mxu0 %v522
    %764 = vmatprep.subr.bf16.mxu0 %v517
    %765 = vmatpush1.bf16.msra.mxu0 %v516
    %766 = vmatprep.subr.bf16.mxu0 %v511
    %767 = vmatpush1.bf16.msra.mxu0 %v510
    %768 = vmatprep.subr.bf16.mxu0 %v505
    %769 = vmatpush1.bf16.msra.mxu0 %v504
    %770 = vmatprep.subr.bf16.mxu0 %v499
    %771 = vmatpush1.bf16.msra.mxu0 %v498
    %772 = vmatprep.subr.bf16.mxu0 %v493
    %773 = vmatpush1.bf16.msra.mxu0 %v492
    %774 = vmatprep.subr.bf16.mxu0 %v487
    %775 = vmatpush1.bf16.msra.mxu0 %v486
    %776 = vmatprep.subr.bf16.mxu0 %v577
    %777 = vmatpush2.bf16.msra.mxu0 %v576
    %778 = vmatprep.subr.bf16.mxu0 %v571
    %779 = vmatpush2.bf16.msra.mxu0 %v570
    %780 = vmatprep.subr.bf16.mxu0 %v565
    %781 = vmatpush2.bf16.msra.mxu0 %v564
    %782 = vmatprep.subr.bf16.mxu0 %v559
    %783 = vmatpush2.bf16.msra.mxu0 %v558
    %784 = vmatprep.subr.bf16.mxu0 %v553
    %785 = vmatpush2.bf16.msra.mxu0 %v552
    %786 = vmatprep.subr.bf16.mxu0 %v547
    %787 = vmatpush2.bf16.msra.mxu0 %v546
    %788 = vmatprep.subr.bf16.mxu0 %v541
    %789 = vmatpush2.bf16.msra.mxu0 %v540
    %790 = vmatprep.subr.bf16.mxu0 %v535
    %791 = vmatpush2.bf16.msra.mxu0 %v534
    %792 = vmatprep.mubr.bf16.mxu0 %v191
    %793 = vmatmul.mubr.bf16.gmra.mxu0 %v190
    %v794 = vpop.f32.mrf.mxu0
    %v795 = vadd.f32 %v173, %v794
    %v796 = vpop.f32.mrf.mxu0
    %v797 = vadd.f32 %v177, %v796
    %v798 = vpop.f32.mrf.mxu0
    %v799 = vadd.f32 %v173, %v798
    %v800 = vpop.f32.mrf.mxu0
    %v801 = vadd.f32 %v177, %v800
    %802 = vdwg.mxu0
    %v803 = vpack.c.bf16 %v713, %v709
    %v804 = vpack.c.bf16 %v715, %v711
    %v805 = vpack.c.bf16 %v756, %v752
    %v806 = vpack.c.bf16 %v758, %v754
    %v807 = vpack.c.bf16 %v799, %v795
    %v808 = vpack.c.bf16 %v801, %v797
    %v815 = vunpack.c.l.b16 %v803
    %v816 = vunpack.c.l.b16 %v804
    %v817 = vunpack.c.l.b16 %v805
    %v818 = vunpack.c.l.b16 %v806
    %v819 = vunpack.c.l.b16 %v807
    %v820 = vunpack.c.l.b16 %v808
    %v821 = vunpack.c.h.b16 %v803
    %v822 = vunpack.c.h.b16 %v804
    %v823 = vunpack.c.h.b16 %v805
    %v824 = vunpack.c.h.b16 %v806
    %v825 = vunpack.c.h.b16 %v807
    %v826 = vunpack.c.h.b16 %v808
    %v827 = vpack.c.b16 %v816, %v815
    %v828 = vpack.c.b16 %v818, %v817
    %v829 = vpack.c.b16 %v820, %v819
    %v830 = vpack.c.b16 %v822, %v821
    %v831 = vpack.c.b16 %v824, %v823
    %v832 = vpack.c.b16 %v826, %v825
    %839 = vst [vmem:[#allocation8] sm:$0xff] %v827
    %840 = vst [vmem:[#allocation8 + $0x8] sm:$0xff] %v828
    %841 = vst [vmem:[#allocation8 + $0x10] sm:$0xff] %v829
    %842 = vst [vmem:[#allocation8 + $0x18] sm:$0xff] %v830
    %843 = vst [vmem:[#allocation8 + $0x20] sm:$0xff] %v831
    %844 = vst [vmem:[#allocation8 + $0x28] sm:$0xff] %v832
    // Predicated region
    $region26: #{tpu_custom_call.1} parent=1 // pred_check
      _
    $region27: #{tpu_custom_call.1} parent=1 // pred_check_branch
      %846 = sbr.rel (0) target = $region29
    $region28: #{tpu_custom_call.1} parent=1 // pred_region
      %s848 = ssub.s32 768, 768
      %849 = vsyncadd [#allocation4], %s848
      %s850 = sshll.u32 [#allocation8], 4
      %s851 = int_to_ptr.vmem [resolvable:$true] %s850
      %856 = dma.vmem_to_hbm [thread:$0]  %s851, 768, %s3, [#allocation4], 384, 384, 24
    $region29: #{tpu_custom_call.1} parent=1 // pred_fallthru
      _
    // Predicated region
    $region30: #{tpu_custom_call.1} parent=1 // pred_check
      _
    $region31: #{tpu_custom_call.1} parent=1 // pred_check_branch
      %858 = sbr.rel (0) target = $region33
    $region32: #{tpu_custom_call.1} parent=1 // pred_region
      %859 = dma.done [#allocation4], 768
    $region33: #{tpu_custom_call.1} parent=1 // pred_fallthru
      _
    %860 = vsyncpa [#allocation3], 1
    %861 = vsyncpa [#allocation6], 1
    %862 = vsyncpa [#allocation4], 1

</llo_original>
